<compile_context>
chip_gen: v7x
topology: tpu7x:2x2x1
jax: 0.10.0
libtpu: 0.0.40
codegen_flags: <defaults>
</compile_context>

<pallas_src>
import functools

import jax
import jax.numpy as jnp
from jax import lax
from jax.experimental import pallas as pl
from jax.experimental.pallas import tpu as pltpu

BN_EPS = 1e-5
NEG_SLOPE = 0.01  # torch.nn.LeakyReLU default


def _round_up(x, m):
    return ((x + m - 1) // m) * m


# ----------------------------------------------------------------------------
# Phase 1: per-channel sum / sum-of-squares of the (bias-free) deconv output.
# Only the (G, 1, 4*Cp) partial statistics are written to HBM.
# ----------------------------------------------------------------------------
def _p1_stats_kernel(xc_ref, w_ref, sum_ref, sq_ref):
    @pl.when(pl.program_id(1) == 0)
    def _():
        sum_ref[...] = jnp.zeros_like(sum_ref)
        sq_ref[...] = jnp.zeros_like(sq_ref)

    # bf16 operands, f32 accumulation on the MXU.  Padded rows of x_col are all-zero and
    # (with no bias) contribute exactly zero to both sums -> no row masking needed.
    y = jnp.dot(xc_ref[...], w_ref[...], preferred_element_type=jnp.float32)
    sum_ref[...] += jnp.sum(y, axis=0, keepdims=True)[None]
    sq_ref[...] += jnp.sum(y * y, axis=0, keepdims=True)[None]


# ----------------------------------------------------------------------------
# Phase 2: recompute the cheap matmul, apply fused BN scale/shift + LeakyReLU.
# ----------------------------------------------------------------------------
def _p2_matmul_norm_act_kernel(xc_ref, w_ref, scale_ref, shift_ref, o_ref):
    y = jnp.dot(xc_ref[...], w_ref[...], preferred_element_type=jnp.float32)
    y = y * scale_ref[...] + shift_ref[...]
    o_ref[...] = jnp.where(y >= 0, y, NEG_SLOPE * y)


def _pick_tiling(M, K, No, requested_tm):
    """Pick tm and a VMEM limit that fit v7x's 64 MiB while keeping tiles large."""
    tm = _round_up(max(8, min(int(requested_tm), _round_up(M, 8))), 8)

    def footprint(t):
        # Conservative: every operand double-buffered (x bf16, w bf16, out f32, stats f32).
        return 2 * (t * K * 2 + K * No * 2 + t * No * 4 + 4 * No * 4)

    budget = 40 * 1024 * 1024  # leaves headroom inside v7x's 64 MiB physical VMEM
    while tm > 64 and footprint(tm) > budget:
        tm //= 2
    vmem_limit = int(min(60 * 1024 * 1024, max(32 * 1024 * 1024, 2 * footprint(tm))))
    return tm, vmem_limit


def conv2d_decode_block(x_nchw, w_deconv, b_deconv, bn_gamma, bn_beta, *, tm=1024):
    """Forward pass of Conv2dDecodeBlock (training-mode BatchNorm).

    x_nchw  : (N, Cin, H, W) f32
    w_deconv: (Cin, Cout, 3, 3)  (PyTorch ConvTranspose2d weight layout)
    b_deconv, bn_gamma, bn_beta: (Cout,)
    returns : (N, Cout, 2H, 2W) f32
    """
    del b_deconv  # Cancelled exactly by the training-mode BatchNorm that follows.

    N, Cin, H, W = x_nchw.shape
    Cout = w_deconv.shape[1]
    assert w_deconv.shape == (Cin, Cout, 3, 3)

    Cp = _round_up(Cout, 32)          # 4*Cp multiple of 128 -> lane-dense output columns
    No = 4 * Cp                       # output cols = 4 sub-pixel phases x padded channels
    K = 4 * Cin                       # 2x2 input patch per output block
    Ho, Wo = 2 * H, 2 * W
    M = N * H * W                     # one matmul row per input pixel

    tm, vmem_limit = _pick_tiling(M, K, No, tm)
    n_tiles = pl.cdiv(M, tm)
    G = 2 if n_tiles >= 2 else 1      # parallel stat groups (shards across v7x's 2 TCs)
    tpg = pl.cdiv(n_tiles, G)
    n_tiles = G * tpg
    Mp = n_tiles * tm

    # ---- sub-pixel im2col: (Mp, 4*Cin), taps (di, dj) in {0,1}^2 -----------------------
    x_nhwc = jnp.transpose(x_nchw, (0, 2, 3, 1)).astype(jnp.float32)
    x_pad = jnp.pad(x_nhwc, ((0, 0), (0, 1), (0, 1), (0, 0)))
    taps = [x_pad[:, di:di + H, dj:dj + W, :] for di in (0, 1) for dj in (0, 1)]
    x_col = jnp.concatenate(taps, axis=-1).reshape(M, K)
    x_col = jnp.pad(x_col, ((0, Mp - M), (0, 0))).astype(jnp.bfloat16)

    # ---- weight matrix (4*Cin, 4*Cp): output phase p=2r+s, tap t=2di+dj ----------------
    # out[n, 2i+r, 2j+s, co] = sum_{di,dj,ci} x[n, i+di, j+dj, ci] *
    #                          w_deconv[ci, co, r-2di+1, s-2dj+1]   (if kh, kw in [0,3))
    w32 = w_deconv.astype(jnp.float32)
    w_mat = jnp.zeros((K, No), jnp.float32)
    for di in (0, 1):
        for dj in (0, 1):
            t = 2 * di + dj
            for r in (0, 1):
                for s in (0, 1):
                    p = 2 * r + s
                    kh = r - 2 * di + 1
                    kw = s - 2 * dj + 1
                    if 0 <= kh < 3 and 0 <= kw < 3:
                        w_mat = w_mat.at[t * Cin:(t + 1) * Cin,
                                         p * Cp:p * Cp + Cout].set(w32[:, :, kh, kw])
    w_mat = w_mat.astype(jnp.bfloat16)

    # --------------- Phase 1: per-channel sum / sum-of-squares --------------------------
    col_sum, col_sq = pl.pallas_call(
        _p1_stats_kernel,
        out_shape=(
            jax.ShapeDtypeStruct((G, 1, No), jnp.float32),
            jax.ShapeDtypeStruct((G, 1, No), jnp.float32),
        ),
        grid=(G, tpg),
        in_specs=[
            pl.BlockSpec((tm, K), lambda g, i: (g * tpg + i, 0)),
            pl.BlockSpec((K, No), lambda g, i: (0, 0)),
        ],
        out_specs=(
            pl.BlockSpec((1, 1, No), lambda g, i: (g, 0, 0)),
            pl.BlockSpec((1, 1, No), lambda g, i: (g, 0, 0)),
        ),
        compiler_params=pltpu.CompilerParams(
            dimension_semantics=("parallel", "arbitrary"),
            vmem_limit_bytes=vmem_limit,
        ),
        cost_estimate=pl.CostEstimate(
            flops=2 * Mp * K * No + 3 * Mp * No,
            transcendentals=0,
            bytes_accessed=Mp * K * 2 + K * No * 2 + 2 * G * No * 4,
        ),
    )(x_col, w_mat)

    # --------------- combine stats, fold BN into scale / shift --------------------------
    count = float(4 * M)                                  # = N * Ho * Wo
    ch_sum = jnp.sum(col_sum.reshape(G * 4, Cp), axis=0)
    ch_sq = jnp.sum(col_sq.reshape(G * 4, Cp), axis=0)
    mean = ch_sum / count
    var = jnp.maximum(ch_sq / count - mean * mean, 0.0)   # biased (training-mode) variance
    inv_std = lax.rsqrt(var + BN_EPS)
    # Padded lanes get gamma = 0 -> scale = shift = 0 on them.
    gamma_pad = jnp.zeros((Cp,), jnp.float32).at[:Cout].set(bn_gamma.astype(jnp.float32))
    beta_pad = jnp.zeros((Cp,), jnp.float32).at[:Cout].set(bn_beta.astype(jnp.float32))
    scale = gamma_pad * inv_std
    shift = beta_pad - mean * scale
    scale4 = jnp.tile(scale, 4)[None, :]                  # (1, 4*Cp)
    shift4 = jnp.tile(shift, 4)[None, :]

    # --------------- Phase 2: recompute matmul, normalize + LeakyReLU -------------------
    out2d = pl.pallas_call(
        _p2_matmul_norm_act_kernel,
        out_shape=jax.ShapeDtypeStruct((Mp, No), jnp.float32),
        grid=(n_tiles,),
        in_specs=[
            pl.BlockSpec((tm, K), lambda i: (i, 0)),
            pl.BlockSpec((K, No), lambda i: (0, 0)),
            pl.BlockSpec((1, No), lambda i: (0, 0)),
            pl.BlockSpec((1, No), lambda i: (0, 0)),
        ],
        out_specs=pl.BlockSpec((tm, No), lambda i: (i, 0)),
        compiler_params=pltpu.CompilerParams(
            dimension_semantics=("parallel",),
            vmem_limit_bytes=vmem_limit,
        ),
        cost_estimate=pl.CostEstimate(
            flops=2 * Mp * K * No + 4 * Mp * No,
            transcendentals=0,
            bytes_accessed=Mp * K * 2 + K * No * 2 + 2 * No * 4 + Mp * No * 4,
        ),
    )(x_col, w_mat, scale4, shift4)

    # ------- pixel-shuffle + channel slice + NCHW conversion in a SINGLE transpose ------
    out6 = out2d[:M].reshape(N, H, W, 2, 2, Cp)                  # (n, i, j, r, s, c)
    out = jnp.transpose(out6[..., :Cout], (0, 5, 1, 3, 2, 4))    # (n, c, i, r, j, s)
    return out.reshape(N, Cout, Ho, Wo)


def _reference(x_nchw, w_deconv, b_deconv, bn_gamma, bn_beta):
    """Pure-JAX reference with matmul operands quantized to bf16 (matching the kernel)."""
    Cout = w_deconv.shape[1]
    xq = x_nchw.astype(jnp.bfloat16).astype(jnp.float32)
    wq = w_deconv.astype(jnp.bfloat16).astype(jnp.float32)
    w_flip = wq[:, :, ::-1, ::-1]                         # (Cin, Cout, kh, kw)
    w_oihw = jnp.transpose(w_flip, (1, 0, 2, 3))          # (Cout, Cin, kh, kw)
    y = lax.conv_general_dilated(
        xq, w_oihw, window_strides=(1, 1),
        padding=((1, 2), (1, 2)), lhs_dilation=(2, 2),
        dimension_numbers=("NCHW", "OIHW", "NCHW"),
        precision=lax.Precision.HIGHEST)
    y = y + b_deconv.reshape(1, Cout, 1, 1)
    mean = jnp.mean(y, axis=(0, 2, 3), keepdims=True)
    var = jnp.mean((y - mean) ** 2, axis=(0, 2, 3), keepdims=True)
    y = (y - mean) * lax.rsqrt(var + BN_EPS)
    y = y * bn_gamma.reshape(1, Cout, 1, 1) + bn_beta.reshape(1, Cout, 1, 1)
    return jnp.where(y >= 0, y, NEG_SLOPE * y)


if __name__ == "__main__":
    # batch=2, in_channels=4, spatial=16x16, out_channels=8 -> output 32x32.
    N, Cin, H, W = 2, 4, 16, 16
    Cout = 8

    key = jax.random.PRNGKey(0)
    kx, kw, kb, kg, kbeta = jax.random.split(key, 5)

    x = jax.random.normal(kx, (N, Cin, H, W), dtype=jnp.float32)
    # ConvTranspose2d weight shape: (in_channels, out_channels, kH, kW)
    w_deconv = jax.random.normal(kw, (Cin, Cout, 3, 3), dtype=jnp.float32) * 0.1
    b_deconv = jax.random.normal(kb, (Cout,), dtype=jnp.float32) * 0.1
    bn_gamma = 1.0 + 0.1 * jax.random.normal(kg, (Cout,), dtype=jnp.float32)
    bn_beta = 0.1 * jax.random.normal(kbeta, (Cout,), dtype=jnp.float32)

    # tm=128 at this toy size so the multi-tile / parallel-group stat path is exercised;
    # production shapes should keep the default tm=1024.
    fwd = jax.jit(functools.partial(conv2d_decode_block, tm=128))
    out = jax.block_until_ready(fwd(x, w_deconv, b_deconv, bn_gamma, bn_beta))

    ref = _reference(x, w_deconv, b_deconv, bn_gamma, bn_beta)
    assert out.shape == (N, Cout, 2 * H, 2 * W), out.shape
    err = float(jnp.max(jnp.abs(out - ref)))
    assert err < 5e-4, err

    print("KERNEL_OK")
</pallas_src>

<mosaic_0001>
module attributes {stable_mosaic.version = 11 : i64} {
  func.func @_p1_stats_kernel(%arg0: i32, %arg1: i32, %arg2: memref<128x16xbf16, #tpu.memory_space<vmem>>, %arg3: memref<16x128xbf16, #tpu.memory_space<vmem>>, %arg4: memref<1x1x128xf32, #tpu.memory_space<vmem>>, %arg5: memref<1x1x128xf32, #tpu.memory_space<vmem>>) attributes {dimension_semantics = [#tpu.dimension_semantics<parallel>, #tpu.dimension_semantics<arbitrary>], iteration_bounds = array<i64: 2, 2>, scalar_prefetch = 0 : i64, scratch_operands = 0 : i64, tpu.core_type = #tpu.core_type<tc>, window_params = [{transform_indices = @transform_0, window_bounds = array<i64: 128, 16>}, {pipeline_mode = #tpu.pipeline_mode<synchronous>, transform_indices = @transform_1, window_bounds = array<i64: 16, 128>}, {transform_indices = @transform_2, window_bounds = array<i64: 1, 1, 128>}, {transform_indices = @transform_3, window_bounds = array<i64: 1, 1, 128>}]} {
    %c0_i32 = arith.constant 0 : i32
    %0 = arith.cmpi eq, %arg1, %c0_i32 : i32
    %1 = arith.extui %0 : i1 to i32
    %c0_i32_0 = arith.constant 0 : i32
    %2 = arith.cmpi ne, %1, %c0_i32_0 : i32
    scf.if %2 {
      %cst_18 = arith.constant 0.000000e+00 : f32
      %19 = vector.broadcast %cst_18 : f32 to vector<1x1x128xf32>
      %c0_19 = arith.constant 0 : index
      %c0_20 = arith.constant 0 : index
      %c0_21 = arith.constant 0 : index
      %20 = vector.load %arg4[%c0_19, %c0_20, %c0_21] : memref<1x1x128xf32, #tpu.memory_space<vmem>>, vector<1x1x128xf32>
      tpu.vector_store %arg4[%c0_19, %c0_20, %c0_21], %19 {strides = array<i32>} : memref<1x1x128xf32, #tpu.memory_space<vmem>>, vector<1x1x128xf32>,
      %cst_22 = arith.constant 0.000000e+00 : f32
      %21 = vector.broadcast %cst_22 : f32 to vector<1x1x128xf32>
      %c0_23 = arith.constant 0 : index
      %c0_24 = arith.constant 0 : index
      %c0_25 = arith.constant 0 : index
      %22 = vector.load %arg5[%c0_23, %c0_24, %c0_25] : memref<1x1x128xf32, #tpu.memory_space<vmem>>, vector<1x1x128xf32>
      tpu.vector_store %arg5[%c0_23, %c0_24, %c0_25], %21 {strides = array<i32>} : memref<1x1x128xf32, #tpu.memory_space<vmem>>, vector<1x1x128xf32>,
    } else {
    }
    %c0 = arith.constant 0 : index
    %c0_1 = arith.constant 0 : index
    %3 = vector.load %arg2[%c0, %c0_1] : memref<128x16xbf16, #tpu.memory_space<vmem>>, vector<128x16xbf16>
    %c0_2 = arith.constant 0 : index
    %c0_3 = arith.constant 0 : index
    %4 = vector.load %arg3[%c0_2, %c0_3] : memref<16x128xbf16, #tpu.memory_space<vmem>>, vector<16x128xbf16>
    %cst = arith.constant dense<0.000000e+00> : vector<128x128xf32>
    %5 = tpu.matmul %3, %4, %cst {dimension_numbers = #tpu.dot_dimension_numbers<[1], [0], [0], [1], [0, 0, 1, 1], [], []>} : vector<128x16xbf16>, vector<16x128xbf16>, vector<128x128xf32> -> vector<128x128xf32>
    %c0_4 = arith.constant 0 : index
    %c0_5 = arith.constant 0 : index
    %c0_6 = arith.constant 0 : index
    %6 = vector.load %arg4[%c0_4, %c0_5, %c0_6] : memref<1x1x128xf32, #tpu.memory_space<vmem>>, vector<1x1x128xf32>
    %cst_7 = arith.constant dense<0.000000e+00> : vector<128xf32>
    %7 = vector.multi_reduction <add>, %5, %cst_7 [0] : vector<128x128xf32> to vector<128xf32>
    %8 = vector.shape_cast %7 : vector<128xf32> to vector<1x128xf32>
    %9 = vector.shape_cast %8 : vector<1x128xf32> to vector<1x1x128xf32>
    %10 = arith.addf %6, %9 : vector<1x1x128xf32>
    %c0_8 = arith.constant 0 : index
    %c0_9 = arith.constant 0 : index
    %c0_10 = arith.constant 0 : index
    %11 = vector.load %arg4[%c0_8, %c0_9, %c0_10] : memref<1x1x128xf32, #tpu.memory_space<vmem>>, vector<1x1x128xf32>
    tpu.vector_store %arg4[%c0_8, %c0_9, %c0_10], %10 {strides = array<i32>} : memref<1x1x128xf32, #tpu.memory_space<vmem>>, vector<1x1x128xf32>,
    %c0_11 = arith.constant 0 : index
    %c0_12 = arith.constant 0 : index
    %c0_13 = arith.constant 0 : index
    %12 = vector.load %arg5[%c0_11, %c0_12, %c0_13] : memref<1x1x128xf32, #tpu.memory_space<vmem>>, vector<1x1x128xf32>
    %13 = arith.mulf %5, %5 : vector<128x128xf32>
    %cst_14 = arith.constant dense<0.000000e+00> : vector<128xf32>
    %14 = vector.multi_reduction <add>, %13, %cst_14 [0] : vector<128x128xf32> to vector<128xf32>
    %15 = vector.shape_cast %14 : vector<128xf32> to vector<1x128xf32>
    %16 = vector.shape_cast %15 : vector<1x128xf32> to vector<1x1x128xf32>
    %17 = arith.addf %12, %16 : vector<1x1x128xf32>
    %c0_15 = arith.constant 0 : index
    %c0_16 = arith.constant 0 : index
    %c0_17 = arith.constant 0 : index
    %18 = vector.load %arg5[%c0_15, %c0_16, %c0_17] : memref<1x1x128xf32, #tpu.memory_space<vmem>>, vector<1x1x128xf32>
    tpu.vector_store %arg5[%c0_15, %c0_16, %c0_17], %17 {strides = array<i32>} : memref<1x1x128xf32, #tpu.memory_space<vmem>>, vector<1x1x128xf32>,
    return
  }
  func.func @transform_0(%arg0: i32, %arg1: i32) -> (i32, i32) {
    %c2_i32 = arith.constant 2 : i32
    %0 = arith.muli %arg0, %c2_i32 : i32
    %1 = arith.addi %0, %arg1 : i32
    %c0_i32 = arith.constant 0 : i32
    %c0_i32_0 = arith.constant 0 : i32
    return %1, %c0_i32 : i32, i32
  }
  func.func @transform_1(%arg0: i32, %arg1: i32) -> (i32, i32) {
    %c0_i32 = arith.constant 0 : i32
    %c0_i32_0 = arith.constant 0 : i32
    %c0_i32_1 = arith.constant 0 : i32
    return %c0_i32, %c0_i32_0 : i32, i32
  }
  func.func @transform_2(%arg0: i32, %arg1: i32) -> (i32, i32, i32) {
    %c0_i32 = arith.constant 0 : i32
    %c0_i32_0 = arith.constant 0 : i32
    %c0_i32_1 = arith.constant 0 : i32
    return %arg0, %c0_i32, %c0_i32_0 : i32, i32, i32
  }
  func.func @transform_3(%arg0: i32, %arg1: i32) -> (i32, i32, i32) {
    %c0_i32 = arith.constant 0 : i32
    %c0_i32_0 = arith.constant 0 : i32
    %c0_i32_1 = arith.constant 0 : i32
    return %arg0, %c0_i32, %c0_i32_0 : i32, i32, i32
  }
}

module attributes {stable_mosaic.version = 11 : i64} {
  func.func @_p2_matmul_norm_act_kernel(%arg0: i32, %arg1: memref<128x16xbf16, #tpu.memory_space<vmem>>, %arg2: memref<16x128xbf16, #tpu.memory_space<vmem>>, %arg3: memref<1x128xf32, #tpu.memory_space<vmem>>, %arg4: memref<1x128xf32, #tpu.memory_space<vmem>>, %arg5: memref<128x128xf32, #tpu.memory_space<vmem>>) attributes {dimension_semantics = [#tpu.dimension_semantics<parallel>], iteration_bounds = array<i64: 4>, scalar_prefetch = 0 : i64, scratch_operands = 0 : i64, tpu.core_type = #tpu.core_type<tc>, window_params = [{transform_indices = @transform_0, window_bounds = array<i64: 128, 16>}, {pipeline_mode = #tpu.pipeline_mode<synchronous>, transform_indices = @transform_1, window_bounds = array<i64: 16, 128>}, {pipeline_mode = #tpu.pipeline_mode<synchronous>, transform_indices = @transform_2, window_bounds = array<i64: 1, 128>}, {pipeline_mode = #tpu.pipeline_mode<synchronous>, transform_indices = @transform_3, window_bounds = array<i64: 1, 128>}, {transform_indices = @transform_4, window_bounds = array<i64: 128, 128>}]} {
    %c0 = arith.constant 0 : index
    %c0_0 = arith.constant 0 : index
    %0 = vector.load %arg1[%c0, %c0_0] : memref<128x16xbf16, #tpu.memory_space<vmem>>, vector<128x16xbf16>
    %c0_1 = arith.constant 0 : index
    %c0_2 = arith.constant 0 : index
    %1 = vector.load %arg2[%c0_1, %c0_2] : memref<16x128xbf16, #tpu.memory_space<vmem>>, vector<16x128xbf16>
    %cst = arith.constant dense<0.000000e+00> : vector<128x128xf32>
    %2 = tpu.matmul %0, %1, %cst {dimension_numbers = #tpu.dot_dimension_numbers<[1], [0], [0], [1], [0, 0, 1, 1], [], []>} : vector<128x16xbf16>, vector<16x128xbf16>, vector<128x128xf32> -> vector<128x128xf32>
    %c0_3 = arith.constant 0 : index
    %c0_4 = arith.constant 0 : index
    %3 = vector.load %arg3[%c0_3, %c0_4] : memref<1x128xf32, #tpu.memory_space<vmem>>, vector<1x128xf32>
    %4 = vector.broadcast %3 : vector<1x128xf32> to vector<128x128xf32>
    %5 = arith.mulf %2, %4 : vector<128x128xf32>
    %c0_5 = arith.constant 0 : index
    %c0_6 = arith.constant 0 : index
    %6 = vector.load %arg4[%c0_5, %c0_6] : memref<1x128xf32, #tpu.memory_space<vmem>>, vector<1x128xf32>
    %7 = vector.broadcast %6 : vector<1x128xf32> to vector<128x128xf32>
    %8 = arith.addf %5, %7 : vector<128x128xf32>
    %cst_7 = arith.constant 0.000000e+00 : f32
    %9 = vector.broadcast %cst_7 : f32 to vector<128x128xf32>
    %10 = arith.cmpf oge, %8, %9 : vector<128x128xf32>
    %cst_8 = arith.constant 0.00999999977 : f32
    %11 = vector.broadcast %cst_8 : f32 to vector<128x128xf32>
    %12 = arith.mulf %11, %8 : vector<128x128xf32>
    %13 = arith.select %10, %8, %12 : vector<128x128xi1>, vector<128x128xf32>
    %c0_9 = arith.constant 0 : index
    %c0_10 = arith.constant 0 : index
    %14 = vector.load %arg5[%c0_9, %c0_10] : memref<128x128xf32, #tpu.memory_space<vmem>>, vector<128x128xf32>
    tpu.vector_store %arg5[%c0_9, %c0_10], %13 {strides = array<i32>} : memref<128x128xf32, #tpu.memory_space<vmem>>, vector<128x128xf32>,
    return
  }
  func.func @transform_0(%arg0: i32) -> (i32, i32) {
    %c0_i32 = arith.constant 0 : i32
    %c0_i32_0 = arith.constant 0 : i32
    return %arg0, %c0_i32 : i32, i32
  }
  func.func @transform_1(%arg0: i32) -> (i32, i32) {
    %c0_i32 = arith.constant 0 : i32
    %c0_i32_0 = arith.constant 0 : i32
    %c0_i32_1 = arith.constant 0 : i32
    return %c0_i32, %c0_i32_0 : i32, i32
  }
  func.func @transform_2(%arg0: i32) -> (i32, i32) {
    %c0_i32 = arith.constant 0 : i32
    %c0_i32_0 = arith.constant 0 : i32
    %c0_i32_1 = arith.constant 0 : i32
    return %c0_i32, %c0_i32_0 : i32, i32
  }
  func.func @transform_3(%arg0: i32) -> (i32, i32) {
    %c0_i32 = arith.constant 0 : i32
    %c0_i32_0 = arith.constant 0 : i32
    %c0_i32_1 = arith.constant 0 : i32
    return %c0_i32, %c0_i32_0 : i32, i32
  }
  func.func @transform_4(%arg0: i32) -> (i32, i32) {
    %c0_i32 = arith.constant 0 : i32
    %c0_i32_0 = arith.constant 0 : i32
    return %arg0, %c0_i32 : i32, i32
  }
}

</mosaic_0001>

<llo_original>
// kernel: tile.18
$region0: #{tile.18}
  #allocation0 [shape = 's32[1]{0}', space=sflag, size = 0x4, scoped, tag = 'scoped memory for tile.18']
  %s0 = inlined_call_operand.vmem [shape: f32[32], index: 0, kind: input, shape index: {}]
  %s1 = inlined_call_operand.vmem [shape: f32[4,32], index: 1, kind: output, shape index: {}]
  // Predicated region
  $region2: #{tile.18} parent=0 // pred_check
    _
  $region3: #{tile.18} parent=0 // pred_check_branch
    %3 = sbr.rel (0) target = $region5
  $region4: #{tile.18} parent=0 // pred_region
    _
  $region5: #{tile.18} parent=0 // pred_fallthru
    _
  %v4 = vld [vmem:[%s0] ss:$0 sm:$0xff]
  %5 = vst [vmem:[%s1] sm:$0xf] %v4

// kernel: tile.19
$region0: #{tile.19}
  %s0 = inlined_call_operand.vmem [shape: f32[4,32], index: 0, kind: input, shape index: {}]
  %s1 = inlined_call_operand.vmem [shape: f32[1,128], index: 1, kind: output, shape index: {}]
  $region1: #{tile.19} parent=0
    #allocation0 [shape = 'u8[4096]{0}', space=vmem, size = 0x1000, scoped, tag = 'scoped mem for output reshape']
    #allocation1 [shape = 'u8[4096]{0}', space=vmem, size = 0x1000, scoped, tag = 'scoped mem for input reshape']
    %s3 = sshllo.u32 0, 4
    %v4 = vld [vmem:[%s0] sm:%s3]
    %5 = vst [vmem:[#allocation1] sm:%s3] %v4
    %v6 = vld [vmem:[#allocation1] sm:$0x1]
    %vm7 = vcmask 261120
    %8 = vst.msk [vmem:[#allocation0] sm:$0x1] %vm7, %v6
    %s9 = scalar_lea.vmem [#allocation1], 3
    %v10 = vld [vmem:[%s9] sm:$0x1]
    %11 = vrot.lane.b32.xlu0 %v10, 96
    %v12 = vpop.permute.xlu0 %11
    %vm13 = vcmask 1048320
    %14 = vst.msk [vmem:[#allocation0] sm:$0x1] %vm13, %v12
    %s15 = scalar_lea.vmem [#allocation1], 2
    %v16 = vld [vmem:[%s15] sm:$0x1]
    %17 = vrot.lane.b32.xlu0 %v16, 64
    %v18 = vpop.permute.xlu0 %17
    %vm19 = vcmask 785920
    %20 = vst.msk [vmem:[#allocation0] sm:$0x1] %vm19, %v18
    %s21 = scalar_lea.vmem [#allocation1], 1
    %v22 = vld [vmem:[%s21] sm:$0x1]
    %23 = vrot.lane.b32.xlu0 %v22, 32
    %v24 = vpop.permute.xlu0 %23
    %vm25 = vcmask 523520
    %26 = vst.msk [vmem:[#allocation0] sm:$0x1] %vm25, %v24
    %s28 = sshllo.u32 0, 1
    %v30 = vld [vmem:[#allocation0] sm:%s28]
    %s31 = sshllo.u32 0, 1
    %32 = vst [vmem:[%s1] sm:%s31] %v30

// kernel: conv2d_decode_block.2
$region0: #{conv2d_decode_block.2}
  #allocation0 [shape = 'u32[]', space=smem, size = 0x4, offset = 0x4, fixed_abs, tag = 'smem constant byte address 0x4 - core index']
  #allocation1 [shape = 'u32[144,128]{1,0:T(1,128)}', space=vmem, size = 0x12000, scoped, tag = 'internal scratch']
  %s0 = inlined_call_operand.vmem [shape: bf16[512,16], index: 0, kind: input, shape index: {}]
  %s1 = inlined_call_operand.vmem [shape: bf16[16,128], index: 1, kind: input, shape index: {}]
  %s2 = inlined_call_operand.vmem [shape: f32[2,1,128], index: 2, kind: output, shape index: {0}]
  %s3 = inlined_call_operand.vmem [shape: f32[2,1,128], index: 3, kind: output, shape index: {1}]
  %4 = xla_tuple %s2, %s3
  %s5 = sld [smem:[#allocation0]]
  $region53: #{conv2d_decode_block.2} parent=0
    _
  %s7 = ssub.s32 1, %s5
  %s8 = scalar_select 0, %s7, %s5
  loop: start=0, step=1, limit=6
  $region2: #{conv2d_decode_block.2} parent=0 // loop_pre_header
    _
  $region3: #{conv2d_decode_block.2} parent=0 // loop_header
    %s10 = sphi 0, %s14
    %p11 = scmp.ge.s32.totalorder %s10, 6
    %s17 = sphi 0, %s29
    %s18 = sphi 0, %s25
    %s19 = sphi 0, %s17
    %s20 = sphi 0, %s18
    %s21 = sphi 0, %s19
    %s22 = sphi 0, %s20
    %s36 = sphi 0, %s38
    %s39 = sphi 0, %s36
    %s40 = sphi 0, %s39
    %s56 = sphi 0, %s40
    %s60 = sphi 0, %s60
    %s62 = sphi 0, %s60
    %s63 = sphi 0, %s62
    %s77 = sphi 0, %s63
    %s83 = sphi 0, %s85
    %s86 = sphi 0, %s83
    %s87 = sphi 0, %s86
    %s103 = sphi 0, %s87
    %s109 = sphi 0, %s111
    %s112 = sphi 0, %s109
    %s113 = sphi 0, %s112
    %s129 = sphi 0, %s113
  $region4: #{conv2d_decode_block.2} parent=0 // loop_header_branch
    %13 = sbr.rel (%p11) target = $region8
  $region5: #{conv2d_decode_block.2} parent=0 // loop_body
    %s15 = ssub.s32 %s10, 1
    %s16 = ssub.s32 %s10, 2
    %s23 = sadd.s32 1, %s18
    %p24 = scmp.ge.s32.totalorder %s23, 2
    %s25 = scalar_select %p24, 0, %s23
    %s26 = sadd.s32 1, %s17
    %s27 = scalar_select %p24, %s26, %s17
    %p28 = scmp.ge.s32.totalorder %s27, 2
    %s29 = scalar_select %p28, 0, %s27
    %s30 = smul.u32 %s17, 2
    %s31 = sadd.s32 %s30, %s18
    %s32 = smul.u32 %s29, 2
    %s33 = sadd.s32 %s32, %s25
    %s34 = ssub.s32 %s31, %s33
    %p35 = scmp.eq.s32.totalorder %s34, 0
    %s37 = sadd.s32 %s36, 1
    %s38 = scalar_select %p35, %s36, %s37
    %p41 = pneg %p35
    %p42 = scmp.eq.s32.totalorder %s10, 3
    %p43 = por %p41, %p42
    %p44 = scmp.ne.s32.totalorder %s36, %s39
    %p45 = scmp.eq.s32.totalorder %s10, 0
    %p46 = por %p44, %p45
    %p47 = scmp.ne.s32.totalorder %s36, %s39
    %p48 = scmp.eq.s32.totalorder %s15, 3
    %p49 = por %p47, %p48
    %p50 = scmp.ne.s32.totalorder %s39, %s40
    %p51 = scmp.eq.s32.totalorder %s15, 0
    %p52 = por %p50, %p51
    %p53 = scmp.ne.s32.totalorder %s39, %s40
    %p54 = scmp.eq.s32.totalorder %s16, 3
    %p55 = por %p53, %p54
    %p57 = scmp.ne.s32.totalorder %s40, %s56
    %p58 = scmp.eq.s32.totalorder %s16, 0
    %p59 = por %p57, %p58
    %s61 = sadd.s32 %s60, 1
    %p64 = scmp.eq.s32.totalorder %s10, 3
    %p65 = scmp.ne.s32.totalorder %s60, %s62
    %p66 = scmp.eq.s32.totalorder %s10, 0
    %p67 = por %p65, %p66
    %p68 = scmp.ne.s32.totalorder %s60, %s62
    %p69 = scmp.eq.s32.totalorder %s15, 3
    %p70 = por %p68, %p69
    %p71 = scmp.ne.s32.totalorder %s62, %s63
    %p72 = scmp.eq.s32.totalorder %s15, 0
    %p73 = por %p71, %p72
    %p74 = scmp.ne.s32.totalorder %s62, %s63
    %p75 = scmp.eq.s32.totalorder %s16, 3
    %p76 = por %p74, %p75
    %p78 = scmp.ne.s32.totalorder %s63, %s77
    %p79 = scmp.eq.s32.totalorder %s16, 0
    %p80 = por %p78, %p79
    %s81 = ssub.s32 %s17, %s29
    %p82 = scmp.eq.s32.totalorder %s81, 0
    %s84 = sadd.s32 %s83, 1
    %s85 = scalar_select %p82, %s83, %s84
    %p88 = pneg %p82
    %p89 = scmp.eq.s32.totalorder %s10, 3
    %p90 = por %p88, %p89
    %p91 = scmp.ne.s32.totalorder %s83, %s86
    %p92 = scmp.eq.s32.totalorder %s10, 0
    %p93 = por %p91, %p92
    %p94 = scmp.ne.s32.totalorder %s83, %s86
    %p95 = scmp.eq.s32.totalorder %s15, 3
    %p96 = por %p94, %p95
    %p97 = scmp.ne.s32.totalorder %s86, %s87
    %p98 = scmp.eq.s32.totalorder %s15, 0
    %p99 = por %p97, %p98
    %p100 = scmp.ne.s32.totalorder %s86, %s87
    %p101 = scmp.eq.s32.totalorder %s16, 3
    %p102 = por %p100, %p101
    %p104 = scmp.ne.s32.totalorder %s87, %s103
    %p105 = scmp.eq.s32.totalorder %s16, 0
    %p106 = por %p104, %p105
    %s107 = ssub.s32 %s17, %s29
    %p108 = scmp.eq.s32.totalorder %s107, 0
    %s110 = sadd.s32 %s109, 1
    %s111 = scalar_select %p108, %s109, %s110
    %p114 = pneg %p108
    %p115 = scmp.eq.s32.totalorder %s10, 3
    %p116 = por %p114, %p115
    %p117 = scmp.ne.s32.totalorder %s109, %s112
    %p118 = scmp.eq.s32.totalorder %s10, 0
    %p119 = por %p117, %p118
    %p120 = scmp.ne.s32.totalorder %s109, %s112
    %p121 = scmp.eq.s32.totalorder %s15, 3
    %p122 = por %p120, %p121
    %p123 = scmp.ne.s32.totalorder %s112, %s113
    %p124 = scmp.eq.s32.totalorder %s15, 0
    %p125 = por %p123, %p124
    %p126 = scmp.ne.s32.totalorder %s112, %s113
    %p127 = scmp.eq.s32.totalorder %s16, 3
    %p128 = por %p126, %p127
    %p130 = scmp.ne.s32.totalorder %s113, %s129
    %p131 = scmp.eq.s32.totalorder %s16, 0
    %p132 = por %p130, %p131
    %p133 = scmp.le.s32.totalorder 1, %s10
    %p134 = scmp.lt.s32.totalorder %s10, 5
    %p135 = pnand %p133, %p134
    %p136 = pneg %p135
    // Predicated region
    $region9: #{conv2d_decode_block.2} parent=5 // pred_check
      _
    $region10: #{conv2d_decode_block.2} parent=5 // pred_check_branch
      %138 = sbr.rel (%p135) target = $region12
    $region11: #{conv2d_decode_block.2} parent=5 // pred_region
      %s139 = ssub.s32 %s10, 1
      // Predicated region
      $region13: #{conv2d_decode_block.2} parent=11 // pred_check
        %p140 = pneg %p73
      $region14: #{conv2d_decode_block.2} parent=11 // pred_check_branch
        %142 = sbr.rel (%p140) target = $region16
      $region15: #{conv2d_decode_block.2} parent=11 // pred_region
        _
      $region16: #{conv2d_decode_block.2} parent=11 // pred_fallthru
        _
    $region12: #{conv2d_decode_block.2} parent=5 // pred_fallthru
      _
    %p143 = scmp.lt.s32.totalorder %s10, 4
    // Predicated region
    $region17: #{conv2d_decode_block.2} parent=5 // pred_check
      %p144 = pneg %p143
    $region18: #{conv2d_decode_block.2} parent=5 // pred_check_branch
      %146 = sbr.rel (%p144) target = $region20
    $region19: #{conv2d_decode_block.2} parent=5 // pred_region
      // Predicated region
      $region21: #{conv2d_decode_block.2} parent=19 // pred_check
        %p147 = pneg %p46
      $region22: #{conv2d_decode_block.2} parent=19 // pred_check_branch
        %149 = sbr.rel (%p147) target = $region24
      $region23: #{conv2d_decode_block.2} parent=19 // pred_region
        %s150 = smul.u32 %s17, 2
        %s151 = sadd.s32 %s150, %s18
        %s152 = smul.u32 16, %s151
        %p153 = scmp.lt.s32.totalorder %s152, 63
        %s154 = scalar_select %p153, %s152, 63
        %s155 = smul.addr %s154, 4
        %s156 = scalar_lea.vmem %s0, %s155
        %s157 = smul.u32 %s17, 2
        %s158 = sadd.s32 %s157, %s18
        %s159 = smul.u32 16, %s158
      $region24: #{conv2d_decode_block.2} parent=19 // pred_fallthru
        _
    $region20: #{conv2d_decode_block.2} parent=5 // pred_fallthru
      _
    %p160 = scmp.le.s32.totalorder 1, %s10
    %p161 = scmp.lt.s32.totalorder %s10, 5
    %p162 = pnand %p160, %p161
    %p163 = pneg %p162
    // Predicated region
    $region25: #{conv2d_decode_block.2} parent=5 // pred_check
      _
    $region26: #{conv2d_decode_block.2} parent=5 // pred_check_branch
      %165 = sbr.rel (%p162) target = $region28
    $region27: #{conv2d_decode_block.2} parent=5 // pred_region
      %s166 = ssub.s32 %s10, 1
      %s167 = smul.u32 %s19, 2
      %s168 = sadd.s32 %s167, %s20
      %s169 = smul.u32 16, %s168
      %p170 = scmp.lt.s32.totalorder %s169, 63
      %s171 = scalar_select %p170, %s169, 63
      %s172 = smul.addr %s171, 4
      %s173 = scalar_lea.vmem %s0, %s172
      %p174 = pneg %p52
      %p175 = pneg %p49
      %p176 = pneg %p73
      %p177 = pneg %p70
      %p178 = pneg %p99
      %p179 = pneg %p96
      %p180 = scmp.lt.s32.totalorder %s19, 1
      %s181 = scalar_select %p180, %s19, 1
      %s182 = scalar_lea.vmem %s2, %s181
      %p183 = pneg %p125
      %p184 = pneg %p122
      %p185 = scmp.lt.s32.totalorder %s19, 1
      %s186 = scalar_select %p185, %s19, 1
      %s187 = scalar_lea.vmem %s3, %s186
      %s188 = smul.u32 %s19, 2
      %s189 = sadd.s32 %s188, %s20
      %s190 = smul.u32 16, %s189
      %p191 = scmp.lt.s32.totalorder %s190, 63
      %s192 = scalar_select %p191, %s190, 63
      %s193 = smul.addr %s192, 4
      %s194 = scalar_lea.vmem %s0, %s193
      %s195 = smul.u32 %s19, 2
      %s196 = sadd.s32 %s195, %s20
      %s197 = smul.u32 16, %s196
      %p198 = scmp.lt.s32.totalorder %s19, 1
      %s199 = scalar_select %p198, %s19, 1
      %s200 = scalar_lea.vmem %s2, %s199
      %p201 = scmp.lt.s32.totalorder %s19, 1
      %s202 = scalar_select %p201, %s19, 1
      %s203 = scalar_lea.vmem %s3, %s202
      %p205 = scmp.eq.s32.totalorder %s20, 0
      // Predicated region
      $region29: #{conv2d_decode_block.2} parent=27 // pred_check
        %p206 = pneg %p205
      $region30: #{conv2d_decode_block.2} parent=27 // pred_check_branch
        %208 = sbr.rel (%p206) target = $region32
      $region31: #{conv2d_decode_block.2} parent=27 // pred_region
        %209 = vst [vmem:[%s200] sm:$0x1] 0.0
        %210 = vst [vmem:[%s203] sm:$0x1] 0.0
      $region32: #{conv2d_decode_block.2} parent=27 // pred_fallthru
        _
      %v211 = vld [vmem:[%s194] sm:$0xf]
      %v212 = vld [vmem:[%s194 + $0x4] sm:$0xf]
      %v213 = vld [vmem:[%s194 + $0x8] sm:$0xf]
      %v214 = vld [vmem:[%s194 + $0xc] sm:$0xf]
      %v215 = vld [vmem:[%s194 + $0x10] sm:$0xf]
      %v216 = vld [vmem:[%s194 + $0x14] sm:$0xf]
      %v217 = vld [vmem:[%s194 + $0x18] sm:$0xf]
      %v218 = vld [vmem:[%s194 + $0x1c] sm:$0xf]
      %v219 = vld [vmem:[%s194 + $0x20] sm:$0xf]
      %v220 = vld [vmem:[%s194 + $0x24] sm:$0xf]
      %v221 = vld [vmem:[%s194 + $0x28] sm:$0xf]
      %v222 = vld [vmem:[%s194 + $0x2c] sm:$0xf]
      %v223 = vld [vmem:[%s194 + $0x30] sm:$0xf]
      %v224 = vld [vmem:[%s194 + $0x34] sm:$0xf]
      %v225 = vld [vmem:[%s194 + $0x38] sm:$0xf]
      %v226 = vld [vmem:[%s194 + $0x3c] sm:$0xf]
      %v227 = vld [vmem:[%s1] sm:$0xf]
      %v228 = vld [vmem:[%s1 + $0x4] sm:$0xf]
      %v245 = vunpack.c.l.b16 %v211
      %v246 = vunpack.c.l.b16 %v212
      %v247 = vunpack.c.l.b16 %v213
      %v248 = vunpack.c.l.b16 %v214
      %v249 = vunpack.c.l.b16 %v215
      %v250 = vunpack.c.l.b16 %v216
      %v251 = vunpack.c.l.b16 %v217
      %v252 = vunpack.c.l.b16 %v218
      %v253 = vunpack.c.l.b16 %v219
      %v254 = vunpack.c.l.b16 %v220
      %v255 = vunpack.c.l.b16 %v221
      %v256 = vunpack.c.l.b16 %v222
      %v257 = vunpack.c.l.b16 %v223
      %v258 = vunpack.c.l.b16 %v224
      %v259 = vunpack.c.l.b16 %v225
      %v260 = vunpack.c.l.b16 %v226
      %v261 = vpack.c.b16 %v246, %v245
      %v262 = vpack.c.b16 %v248, %v247
      %v263 = vpack.c.b16 %v250, %v249
      %v264 = vpack.c.b16 %v252, %v251
      %v265 = vpack.c.b16 %v254, %v253
      %v266 = vpack.c.b16 %v256, %v255
      %v267 = vpack.c.b16 %v258, %v257
      %v268 = vpack.c.b16 %v260, %v259
      %v271 = vunpack.c.l.b16 %v227
      %v272 = vunpack.c.l.b16 %v228
      %v273 = vpack.c.b16 %v272, %v271
      %vm275 = vcmask 130048
      %v277 = vsel %vm275, %v261, 0
      %v280 = vsel %vm275, %v262, 0
      %v283 = vsel %vm275, %v263, 0
      %v286 = vsel %vm275, %v264, 0
      %v289 = vsel %vm275, %v265, 0
      %v292 = vsel %vm275, %v266, 0
      %v295 = vsel %vm275, %v267, 0
      %v298 = vsel %vm275, %v268, 0
      %300 = vmatprep.subr.bf16.mxu0 0
      %301 = vmatpush1.bf16.msra.mxu0 %v273
      %302 = vmatprep.subr.bf16.mxu0 0
      %303 = vmatpush1.bf16.msra.mxu0 0
      %304 = vmatprep.subr.bf16.mxu0 0
      %305 = vmatpush1.bf16.msra.mxu0 0
      %306 = vmatprep.subr.bf16.mxu0 0
      %307 = vmatpush1.bf16.msra.mxu0 0
      %308 = vmatprep.subr.bf16.mxu0 0
      %309 = vmatpush1.bf16.msra.mxu0 0
      %310 = vmatprep.subr.bf16.mxu0 0
      %311 = vmatpush1.bf16.msra.mxu0 0
      %312 = vmatprep.subr.bf16.mxu0 0
      %313 = vmatpush1.bf16.msra.mxu0 0
      %314 = vmatprep.subr.bf16.mxu0 0
      %315 = vmatpush1.bf16.msra.mxu0 0
      %316 = vmatprep.subr.bf16.mxu0 0
      %317 = vmatpush1.bf16.msra.mxu0 0
      %318 = vmatprep.subr.bf16.mxu0 0
      %319 = vmatpush1.bf16.msra.mxu0 0
      %320 = vmatprep.subr.bf16.mxu0 0
      %321 = vmatpush1.bf16.msra.mxu0 0
      %322 = vmatprep.subr.bf16.mxu0 0
      %323 = vmatpush1.bf16.msra.mxu0 0
      %324 = vmatprep.subr.bf16.mxu0 0
      %325 = vmatpush1.bf16.msra.mxu0 0
      %326 = vmatprep.subr.bf16.mxu0 0
      %327 = vmatpush1.bf16.msra.mxu0 0
      %328 = vmatprep.subr.bf16.mxu0 0
      %329 = vmatpush1.bf16.msra.mxu0 0
      %330 = vmatprep.subr.bf16.mxu0 0
      %331 = vmatpush1.bf16.msra.mxu0 0
      %332 = vmatprep.mubr.bf16.mxu0 0
      %333 = vmatmul.mubr.bf16.gmra.mrb[0].mxu0 %v277
      %v334 = vpop.f32.mrb[0].mxu0
      %v335 = vadd.f32 0.0, %v334
      %v336 = vpop.f32.mrb[0].mxu0
      %v337 = vpop.f32.mrb[0].mxu0
      %v338 = vadd.f32 0.0, %v337
      %v339 = vpop.f32.mrb[0].mxu0
      %340 = vmatprep.mubr.bf16.mxu0 0
      %341 = vmatmul.mubr.bf16.gmra.mrb[0].mxu0 %v280
      %v342 = vpop.f32.mrb[0].mxu0
      %v343 = vadd.f32 0.0, %v342
      %v344 = vpop.f32.mrb[0].mxu0
      %v345 = vpop.f32.mrb[0].mxu0
      %v346 = vadd.f32 0.0, %v345
      %v347 = vpop.f32.mrb[0].mxu0
      %348 = vmatprep.mubr.bf16.mxu0 0
      %349 = vmatmul.mubr.bf16.gmra.mrb[0].mxu0 %v283
      %v350 = vpop.f32.mrb[0].mxu0
      %v351 = vadd.f32 0.0, %v350
      %v352 = vpop.f32.mrb[0].mxu0
      %v353 = vpop.f32.mrb[0].mxu0
      %v354 = vadd.f32 0.0, %v353
      %v355 = vpop.f32.mrb[0].mxu0
      %356 = vmatprep.mubr.bf16.mxu0 0
      %357 = vmatmul.mubr.bf16.gmra.mrb[0].mxu0 %v286
      %v358 = vpop.f32.mrb[0].mxu0
      %v359 = vadd.f32 0.0, %v358
      %v360 = vpop.f32.mrb[0].mxu0
      %v361 = vpop.f32.mrb[0].mxu0
      %v362 = vadd.f32 0.0, %v361
      %v363 = vpop.f32.mrb[0].mxu0
      %364 = vmatprep.mubr.bf16.mxu0 0
      %365 = vmatmul.mubr.bf16.gmra.mrb[0].mxu0 %v289
      %v366 = vpop.f32.mrb[0].mxu0
      %v367 = vadd.f32 0.0, %v366
      %v368 = vpop.f32.mrb[0].mxu0
      %v369 = vpop.f32.mrb[0].mxu0
      %v370 = vadd.f32 0.0, %v369
      %v371 = vpop.f32.mrb[0].mxu0
      %372 = vmatprep.mubr.bf16.mxu0 0
      %373 = vmatmul.mubr.bf16.gmra.mrb[0].mxu0 %v292
      %v374 = vpop.f32.mrb[0].mxu0
      %v375 = vadd.f32 0.0, %v374
      %v376 = vpop.f32.mrb[0].mxu0
      %v377 = vpop.f32.mrb[0].mxu0
      %v378 = vadd.f32 0.0, %v377
      %v379 = vpop.f32.mrb[0].mxu0
      %380 = vmatprep.mubr.bf16.mxu0 0
      %381 = vmatmul.mubr.bf16.gmra.mrb[0].mxu0 %v295
      %v382 = vpop.f32.mrb[0].mxu0
      %v383 = vadd.f32 0.0, %v382
      %v384 = vpop.f32.mrb[0].mxu0
      %v385 = vpop.f32.mrb[0].mxu0
      %v386 = vadd.f32 0.0, %v385
      %v387 = vpop.f32.mrb[0].mxu0
      %388 = vmatprep.mubr.bf16.mxu0 0
      %389 = vmatmul.mubr.bf16.gmra.mrb[0].mxu0 %v298
      %v390 = vpop.f32.mrb[0].mxu0
      %v391 = vadd.f32 0.0, %v390
      %v392 = vpop.f32.mrb[0].mxu0
      %v393 = vpop.f32.mrb[0].mxu0
      %v394 = vadd.f32 0.0, %v393
      %v395 = vpop.f32.mrb[0].mxu0
      %396 = vdwg.mxu0
      %v397 = vld [vmem:[%s200] sm:$0x1]
      %v398 = vadd.f32 %v335, %v338
      %v399 = vadd.f32 %v398, %v343
      %v400 = vadd.f32 %v399, %v346
      %v401 = vadd.f32 %v400, %v351
      %v402 = vadd.f32 %v401, %v354
      %v403 = vadd.f32 %v402, %v359
      %v404 = vadd.f32 %v403, %v362
      %v405 = vadd.f32 %v404, %v367
      %v406 = vadd.f32 %v405, %v370
      %v407 = vadd.f32 %v406, %v375
      %v408 = vadd.f32 %v407, %v378
      %v409 = vadd.f32 %v408, %v383
      %v410 = vadd.f32 %v409, %v386
      %v411 = vadd.f32 %v410, %v391
      %v412 = vadd.f32 %v411, %v394
      %v413 = vrot.slane %v412, 4
      %v414 = vadd.f32 %v412, %v413
      %v415 = vrot.slane %v414, 2
      %v416 = vadd.f32 %v414, %v415
      %v417 = vrot.slane %v416, 1
      %v418 = vadd.f32 %v416, %v417
      %v419 = vadd.f32 %v397, %v418
      %420 = vst [vmem:[%s200] sm:$0x1] %v419
      %v421 = vld [vmem:[%s203] sm:$0x1]
      %v422 = vmul.f32 %v335, %v335
      %v423 = vmul.f32 %v338, %v338
      %v424 = vmul.f32 %v343, %v343
      %v425 = vmul.f32 %v346, %v346
      %v426 = vmul.f32 %v351, %v351
      %v427 = vmul.f32 %v354, %v354
      %v428 = vmul.f32 %v359, %v359
      %v429 = vmul.f32 %v362, %v362
      %v430 = vmul.f32 %v367, %v367
      %v431 = vmul.f32 %v370, %v370
      %v432 = vmul.f32 %v375, %v375
      %v433 = vmul.f32 %v378, %v378
      %v434 = vmul.f32 %v383, %v383
      %v435 = vmul.f32 %v386, %v386
      %v436 = vmul.f32 %v391, %v391
      %v437 = vmul.f32 %v394, %v394
      %v438 = vadd.f32 %v422, %v423
      %v439 = vadd.f32 %v438, %v424
      %v440 = vadd.f32 %v439, %v425
      %v441 = vadd.f32 %v440, %v426
      %v442 = vadd.f32 %v441, %v427
      %v443 = vadd.f32 %v442, %v428
      %v444 = vadd.f32 %v443, %v429
      %v445 = vadd.f32 %v444, %v430
      %v446 = vadd.f32 %v445, %v431
      %v447 = vadd.f32 %v446, %v432
      %v448 = vadd.f32 %v447, %v433
      %v449 = vadd.f32 %v448, %v434
      %v450 = vadd.f32 %v449, %v435
      %v451 = vadd.f32 %v450, %v436
      %v452 = vadd.f32 %v451, %v437
      %v453 = vrot.slane %v452, 4
      %v454 = vadd.f32 %v452, %v453
      %v455 = vrot.slane %v454, 2
      %v456 = vadd.f32 %v454, %v455
      %v457 = vrot.slane %v456, 1
      %v458 = vadd.f32 %v456, %v457
      %v459 = vadd.f32 %v421, %v458
      %460 = vst [vmem:[%s203] sm:$0x1] %v459
      %p461 = scmp.lt.s32.totalorder %s19, 1
      %s462 = scalar_select %p461, %s19, 1
      %s463 = scalar_lea.vmem %s2, %s462
      %p464 = scmp.lt.s32.totalorder %s19, 1
      %s465 = scalar_select %p464, %s19, 1
      %s466 = scalar_lea.vmem %s3, %s465
      // Predicated region
      $region33: #{conv2d_decode_block.2} parent=27 // pred_check
        %p467 = pneg %p96
      $region34: #{conv2d_decode_block.2} parent=27 // pred_check_branch
        %469 = sbr.rel (%p467) target = $region36
      $region35: #{conv2d_decode_block.2} parent=27 // pred_region
        _
      $region36: #{conv2d_decode_block.2} parent=27 // pred_fallthru
        _
      // Predicated region
      $region37: #{conv2d_decode_block.2} parent=27 // pred_check
        %p470 = pneg %p122
      $region38: #{conv2d_decode_block.2} parent=27 // pred_check_branch
        %472 = sbr.rel (%p470) target = $region40
      $region39: #{conv2d_decode_block.2} parent=27 // pred_region
        _
      $region40: #{conv2d_decode_block.2} parent=27 // pred_fallthru
        _
    $region28: #{conv2d_decode_block.2} parent=5 // pred_fallthru
      _
    %p473 = scmp.le.s32.totalorder 2, %s10
    // Predicated region
    $region41: #{conv2d_decode_block.2} parent=5 // pred_check
      %p474 = pneg %p473
    $region42: #{conv2d_decode_block.2} parent=5 // pred_check_branch
      %476 = sbr.rel (%p474) target = $region44
    $region43: #{conv2d_decode_block.2} parent=5 // pred_region
      %s477 = ssub.s32 %s10, 2
      // Predicated region
      $region45: #{conv2d_decode_block.2} parent=43 // pred_check
        %p478 = pneg %p102
      $region46: #{conv2d_decode_block.2} parent=43 // pred_check_branch
        %480 = sbr.rel (%p478) target = $region48
      $region47: #{conv2d_decode_block.2} parent=43 // pred_region
        %p481 = scmp.lt.s32.totalorder %s21, 1
        %s482 = scalar_select %p481, %s21, 1
        %s483 = scalar_lea.vmem %s2, %s482
      $region48: #{conv2d_decode_block.2} parent=43 // pred_fallthru
        _
      // Predicated region
      $region49: #{conv2d_decode_block.2} parent=43 // pred_check
        %p484 = pneg %p128
      $region50: #{conv2d_decode_block.2} parent=43 // pred_check_branch
        %486 = sbr.rel (%p484) target = $region52
      $region51: #{conv2d_decode_block.2} parent=43 // pred_region
        %p487 = scmp.lt.s32.totalorder %s21, 1
        %s488 = scalar_select %p487, %s21, 1
        %s489 = scalar_lea.vmem %s3, %s488
      $region52: #{conv2d_decode_block.2} parent=43 // pred_fallthru
        _
    $region44: #{conv2d_decode_block.2} parent=5 // pred_fallthru
      _
  $region6: #{conv2d_decode_block.2} parent=0 // loop_footer
    %s14 = sadd.s32 1, %s10
  $region7: #{conv2d_decode_block.2} parent=0 // loop_footer_branch
    %9 = sbr.rel target = $region3
  $region8: #{conv2d_decode_block.2} parent=0 // loop_exit
    _

// kernel: conv2d_decode_block.3
$region0: #{conv2d_decode_block.3}
  #allocation0 [shape = 'u32[]', space=smem, size = 0x4, offset = 0x4, fixed_abs, tag = 'smem constant byte address 0x4 - core index']
  #allocation1 [shape = 'u32[144,128]{1,0:T(1,128)}', space=vmem, size = 0x12000, scoped, tag = 'internal scratch']
  %s0 = inlined_call_operand.vmem [shape: bf16[512,16], index: 0, kind: input, shape index: {}]
  %s1 = inlined_call_operand.vmem [shape: bf16[16,128], index: 1, kind: input, shape index: {}]
  %s2 = inlined_call_operand.vmem [shape: f32[1,128], index: 2, kind: input, shape index: {}]
  %s3 = inlined_call_operand.vmem [shape: f32[1,128], index: 3, kind: input, shape index: {}]
  %s4 = inlined_call_operand.vmem [shape: f32[512,128], index: 4, kind: output, shape index: {}]
  %s5 = sld [smem:[#allocation0]]
  $region49: #{conv2d_decode_block.3} parent=0
    _
  %s7 = ssub.s32 1, %s5
  %s8 = scalar_select 0, %s7, %s5
  loop: start=0, step=1, limit=6
  $region2: #{conv2d_decode_block.3} parent=0 // loop_pre_header
    _
  $region3: #{conv2d_decode_block.3} parent=0 // loop_header
    %s10 = sphi 0, %s14
    %p11 = scmp.ge.s32.totalorder %s10, 6
    %s20 = sphi 0, %s22
    %s23 = sphi 0, %s20
    %s24 = sphi 0, %s23
    %s40 = sphi 0, %s24
    %s44 = sphi 0, %s44
    %s46 = sphi 0, %s44
    %s47 = sphi 0, %s46
    %s61 = sphi 0, %s47
    %s65 = sphi 0, %s65
    %s67 = sphi 0, %s65
    %s68 = sphi 0, %s67
    %s82 = sphi 0, %s68
    %s86 = sphi 0, %s86
    %s88 = sphi 0, %s86
    %s89 = sphi 0, %s88
    %s103 = sphi 0, %s89
    %s109 = sphi 0, %s111
    %s112 = sphi 0, %s109
    %s113 = sphi 0, %s112
    %s129 = sphi 0, %s113
  $region4: #{conv2d_decode_block.3} parent=0 // loop_header_branch
    %13 = sbr.rel (%p11) target = $region8
  $region5: #{conv2d_decode_block.3} parent=0 // loop_body
    %s15 = ssub.s32 %s10, 1
    %s16 = ssub.s32 %s10, 2
    %s17 = sadd.s32 %s10, 1
    %s18 = ssub.s32 %s10, %s17
    %p19 = scmp.eq.s32.totalorder %s18, 0
    %s21 = sadd.s32 %s20, 1
    %s22 = scalar_select %p19, %s20, %s21
    %p25 = pneg %p19
    %p26 = scmp.eq.s32.totalorder %s10, 3
    %p27 = por %p25, %p26
    %p28 = scmp.ne.s32.totalorder %s20, %s23
    %p29 = scmp.eq.s32.totalorder %s10, 0
    %p30 = por %p28, %p29
    %p31 = scmp.ne.s32.totalorder %s20, %s23
    %p32 = scmp.eq.s32.totalorder %s15, 3
    %p33 = por %p31, %p32
    %p34 = scmp.ne.s32.totalorder %s23, %s24
    %p35 = scmp.eq.s32.totalorder %s15, 0
    %p36 = por %p34, %p35
    %p37 = scmp.ne.s32.totalorder %s23, %s24
    %p38 = scmp.eq.s32.totalorder %s16, 3
    %p39 = por %p37, %p38
    %p41 = scmp.ne.s32.totalorder %s24, %s40
    %p42 = scmp.eq.s32.totalorder %s16, 0
    %p43 = por %p41, %p42
    %s45 = sadd.s32 %s44, 1
    %p48 = scmp.eq.s32.totalorder %s10, 3
    %p49 = scmp.ne.s32.totalorder %s44, %s46
    %p50 = scmp.eq.s32.totalorder %s10, 0
    %p51 = por %p49, %p50
    %p52 = scmp.ne.s32.totalorder %s44, %s46
    %p53 = scmp.eq.s32.totalorder %s15, 3
    %p54 = por %p52, %p53
    %p55 = scmp.ne.s32.totalorder %s46, %s47
    %p56 = scmp.eq.s32.totalorder %s15, 0
    %p57 = por %p55, %p56
    %p58 = scmp.ne.s32.totalorder %s46, %s47
    %p59 = scmp.eq.s32.totalorder %s16, 3
    %p60 = por %p58, %p59
    %p62 = scmp.ne.s32.totalorder %s47, %s61
    %p63 = scmp.eq.s32.totalorder %s16, 0
    %p64 = por %p62, %p63
    %s66 = sadd.s32 %s65, 1
    %p69 = scmp.eq.s32.totalorder %s10, 3
    %p70 = scmp.ne.s32.totalorder %s65, %s67
    %p71 = scmp.eq.s32.totalorder %s10, 0
    %p72 = por %p70, %p71
    %p73 = scmp.ne.s32.totalorder %s65, %s67
    %p74 = scmp.eq.s32.totalorder %s15, 3
    %p75 = por %p73, %p74
    %p76 = scmp.ne.s32.totalorder %s67, %s68
    %p77 = scmp.eq.s32.totalorder %s15, 0
    %p78 = por %p76, %p77
    %p79 = scmp.ne.s32.totalorder %s67, %s68
    %p80 = scmp.eq.s32.totalorder %s16, 3
    %p81 = por %p79, %p80
    %p83 = scmp.ne.s32.totalorder %s68, %s82
    %p84 = scmp.eq.s32.totalorder %s16, 0
    %p85 = por %p83, %p84
    %s87 = sadd.s32 %s86, 1
    %p90 = scmp.eq.s32.totalorder %s10, 3
    %p91 = scmp.ne.s32.totalorder %s86, %s88
    %p92 = scmp.eq.s32.totalorder %s10, 0
    %p93 = por %p91, %p92
    %p94 = scmp.ne.s32.totalorder %s86, %s88
    %p95 = scmp.eq.s32.totalorder %s15, 3
    %p96 = por %p94, %p95
    %p97 = scmp.ne.s32.totalorder %s88, %s89
    %p98 = scmp.eq.s32.totalorder %s15, 0
    %p99 = por %p97, %p98
    %p100 = scmp.ne.s32.totalorder %s88, %s89
    %p101 = scmp.eq.s32.totalorder %s16, 3
    %p102 = por %p100, %p101
    %p104 = scmp.ne.s32.totalorder %s89, %s103
    %p105 = scmp.eq.s32.totalorder %s16, 0
    %p106 = por %p104, %p105
    %s107 = ssub.s32 %s10, %s17
    %p108 = scmp.eq.s32.totalorder %s107, 0
    %s110 = sadd.s32 %s109, 1
    %s111 = scalar_select %p108, %s109, %s110
    %p114 = pneg %p108
    %p115 = scmp.eq.s32.totalorder %s10, 3
    %p116 = por %p114, %p115
    %p117 = scmp.ne.s32.totalorder %s109, %s112
    %p118 = scmp.eq.s32.totalorder %s10, 0
    %p119 = por %p117, %p118
    %p120 = scmp.ne.s32.totalorder %s109, %s112
    %p121 = scmp.eq.s32.totalorder %s15, 3
    %p122 = por %p120, %p121
    %p123 = scmp.ne.s32.totalorder %s112, %s113
    %p124 = scmp.eq.s32.totalorder %s15, 0
    %p125 = por %p123, %p124
    %p126 = scmp.ne.s32.totalorder %s112, %s113
    %p127 = scmp.eq.s32.totalorder %s16, 3
    %p128 = por %p126, %p127
    %p130 = scmp.ne.s32.totalorder %s113, %s129
    %p131 = scmp.eq.s32.totalorder %s16, 0
    %p132 = por %p130, %p131
    %p133 = scmp.le.s32.totalorder 1, %s10
    %p134 = scmp.lt.s32.totalorder %s10, 5
    %p135 = pnand %p133, %p134
    %p136 = pneg %p135
    // Predicated region
    $region9: #{conv2d_decode_block.3} parent=5 // pred_check
      _
    $region10: #{conv2d_decode_block.3} parent=5 // pred_check_branch
      %138 = sbr.rel (%p135) target = $region12
    $region11: #{conv2d_decode_block.3} parent=5 // pred_region
      %s139 = ssub.s32 %s10, 1
      // Predicated region
      $region13: #{conv2d_decode_block.3} parent=11 // pred_check
        %p140 = pneg %p57
      $region14: #{conv2d_decode_block.3} parent=11 // pred_check_branch
        %142 = sbr.rel (%p140) target = $region16
      $region15: #{conv2d_decode_block.3} parent=11 // pred_region
        _
      $region16: #{conv2d_decode_block.3} parent=11 // pred_fallthru
        _
      // Predicated region
      $region17: #{conv2d_decode_block.3} parent=11 // pred_check
        %p143 = pneg %p78
      $region18: #{conv2d_decode_block.3} parent=11 // pred_check_branch
        %145 = sbr.rel (%p143) target = $region20
      $region19: #{conv2d_decode_block.3} parent=11 // pred_region
        _
      $region20: #{conv2d_decode_block.3} parent=11 // pred_fallthru
        _
      // Predicated region
      $region21: #{conv2d_decode_block.3} parent=11 // pred_check
        %p146 = pneg %p99
      $region22: #{conv2d_decode_block.3} parent=11 // pred_check_branch
        %148 = sbr.rel (%p146) target = $region24
      $region23: #{conv2d_decode_block.3} parent=11 // pred_region
        _
      $region24: #{conv2d_decode_block.3} parent=11 // pred_fallthru
        _
    $region12: #{conv2d_decode_block.3} parent=5 // pred_fallthru
      _
    %p149 = scmp.lt.s32.totalorder %s10, 4
    // Predicated region
    $region25: #{conv2d_decode_block.3} parent=5 // pred_check
      %p150 = pneg %p149
    $region26: #{conv2d_decode_block.3} parent=5 // pred_check_branch
      %152 = sbr.rel (%p150) target = $region28
    $region27: #{conv2d_decode_block.3} parent=5 // pred_region
      // Predicated region
      $region29: #{conv2d_decode_block.3} parent=27 // pred_check
        %p153 = pneg %p30
      $region30: #{conv2d_decode_block.3} parent=27 // pred_check_branch
        %155 = sbr.rel (%p153) target = $region32
      $region31: #{conv2d_decode_block.3} parent=27 // pred_region
        %s156 = smul.u32 16, %s10
        %p157 = scmp.lt.s32.totalorder %s156, 63
        %s158 = scalar_select %p157, %s156, 63
        %s159 = smul.addr %s158, 4
        %s160 = scalar_lea.vmem %s0, %s159
        %s161 = smul.u32 16, %s10
      $region32: #{conv2d_decode_block.3} parent=27 // pred_fallthru
        _
    $region28: #{conv2d_decode_block.3} parent=5 // pred_fallthru
      _
    %p162 = scmp.le.s32.totalorder 1, %s10
    %p163 = scmp.lt.s32.totalorder %s10, 5
    %p164 = pnand %p162, %p163
    %p165 = pneg %p164
    // Predicated region
    $region33: #{conv2d_decode_block.3} parent=5 // pred_check
      _
    $region34: #{conv2d_decode_block.3} parent=5 // pred_check_branch
      %167 = sbr.rel (%p164) target = $region36
    $region35: #{conv2d_decode_block.3} parent=5 // pred_region
      %s168 = ssub.s32 %s10, 1
      %s169 = smul.u32 16, %s15
      %p170 = scmp.lt.s32.totalorder %s169, 63
      %s171 = scalar_select %p170, %s169, 63
      %s172 = smul.addr %s171, 4
      %s173 = scalar_lea.vmem %s0, %s172
      %p174 = pneg %p36
      %p175 = pneg %p33
      %p176 = pneg %p57
      %p177 = pneg %p54
      %p178 = pneg %p78
      %p179 = pneg %p75
      %p180 = pneg %p99
      %p181 = pneg %p96
      %p182 = pneg %p125
      %p183 = pneg %p122
      %s184 = smul.u32 16, %s15
      %p185 = scmp.lt.s32.totalorder %s184, 63
      %s186 = scalar_select %p185, %s184, 63
      %s187 = smul.addr %s186, 8
      %s188 = scalar_lea.vmem %s4, %s187
      %s189 = smul.u32 16, %s15
      %p190 = scmp.lt.s32.totalorder %s189, 63
      %s191 = scalar_select %p190, %s189, 63
      %s192 = smul.addr %s191, 4
      %s193 = scalar_lea.vmem %s0, %s192
      %s194 = smul.u32 16, %s15
      %s195 = smul.u32 16, %s15
      %p196 = scmp.lt.s32.totalorder %s195, 63
      %s197 = scalar_select %p196, %s195, 63
      %s198 = smul.addr %s197, 8
      %s199 = scalar_lea.vmem %s4, %s198
      %s200 = smul.u32 16, %s15
      %v202 = vld [vmem:[%s193] sm:$0xf]
      %v203 = vld [vmem:[%s193 + $0x4] sm:$0xf]
      %v204 = vld [vmem:[%s193 + $0x8] sm:$0xf]
      %v205 = vld [vmem:[%s193 + $0xc] sm:$0xf]
      %v206 = vld [vmem:[%s193 + $0x10] sm:$0xf]
      %v207 = vld [vmem:[%s193 + $0x14] sm:$0xf]
      %v208 = vld [vmem:[%s193 + $0x18] sm:$0xf]
      %v209 = vld [vmem:[%s193 + $0x1c] sm:$0xf]
      %v210 = vld [vmem:[%s193 + $0x20] sm:$0xf]
      %v211 = vld [vmem:[%s193 + $0x24] sm:$0xf]
      %v212 = vld [vmem:[%s193 + $0x28] sm:$0xf]
      %v213 = vld [vmem:[%s193 + $0x2c] sm:$0xf]
      %v214 = vld [vmem:[%s193 + $0x30] sm:$0xf]
      %v215 = vld [vmem:[%s193 + $0x34] sm:$0xf]
      %v216 = vld [vmem:[%s193 + $0x38] sm:$0xf]
      %v217 = vld [vmem:[%s193 + $0x3c] sm:$0xf]
      %v218 = vld [vmem:[%s1] sm:$0xf]
      %v219 = vld [vmem:[%s1 + $0x4] sm:$0xf]
      %v236 = vunpack.c.l.b16 %v202
      %v237 = vunpack.c.l.b16 %v203
      %v238 = vunpack.c.l.b16 %v204
      %v239 = vunpack.c.l.b16 %v205
      %v240 = vunpack.c.l.b16 %v206
      %v241 = vunpack.c.l.b16 %v207
      %v242 = vunpack.c.l.b16 %v208
      %v243 = vunpack.c.l.b16 %v209
      %v244 = vunpack.c.l.b16 %v210
      %v245 = vunpack.c.l.b16 %v211
      %v246 = vunpack.c.l.b16 %v212
      %v247 = vunpack.c.l.b16 %v213
      %v248 = vunpack.c.l.b16 %v214
      %v249 = vunpack.c.l.b16 %v215
      %v250 = vunpack.c.l.b16 %v216
      %v251 = vunpack.c.l.b16 %v217
      %v252 = vpack.c.b16 %v237, %v236
      %v253 = vpack.c.b16 %v239, %v238
      %v254 = vpack.c.b16 %v241, %v240
      %v255 = vpack.c.b16 %v243, %v242
      %v256 = vpack.c.b16 %v245, %v244
      %v257 = vpack.c.b16 %v247, %v246
      %v258 = vpack.c.b16 %v249, %v248
      %v259 = vpack.c.b16 %v251, %v250
      %v262 = vunpack.c.l.b16 %v218
      %v263 = vunpack.c.l.b16 %v219
      %v264 = vpack.c.b16 %v263, %v262
      %vm266 = vcmask 130048
      %v268 = vsel %vm266, %v252, 0
      %v271 = vsel %vm266, %v253, 0
      %v274 = vsel %vm266, %v254, 0
      %v277 = vsel %vm266, %v255, 0
      %v280 = vsel %vm266, %v256, 0
      %v283 = vsel %vm266, %v257, 0
      %v286 = vsel %vm266, %v258, 0
      %v289 = vsel %vm266, %v259, 0
      %291 = vmatprep.subr.bf16.mxu0 0
      %292 = vmatpush1.bf16.msra.mxu0 %v264
      %293 = vmatprep.subr.bf16.mxu0 0
      %294 = vmatpush1.bf16.msra.mxu0 0
      %295 = vmatprep.subr.bf16.mxu0 0
      %296 = vmatpush1.bf16.msra.mxu0 0
      %297 = vmatprep.subr.bf16.mxu0 0
      %298 = vmatpush1.bf16.msra.mxu0 0
      %299 = vmatprep.subr.bf16.mxu0 0
      %300 = vmatpush1.bf16.msra.mxu0 0
      %301 = vmatprep.subr.bf16.mxu0 0
      %302 = vmatpush1.bf16.msra.mxu0 0
      %303 = vmatprep.subr.bf16.mxu0 0
      %304 = vmatpush1.bf16.msra.mxu0 0
      %305 = vmatprep.subr.bf16.mxu0 0
      %306 = vmatpush1.bf16.msra.mxu0 0
      %307 = vmatprep.subr.bf16.mxu0 0
      %308 = vmatpush1.bf16.msra.mxu0 0
      %309 = vmatprep.subr.bf16.mxu0 0
      %310 = vmatpush1.bf16.msra.mxu0 0
      %311 = vmatprep.subr.bf16.mxu0 0
      %312 = vmatpush1.bf16.msra.mxu0 0
      %313 = vmatprep.subr.bf16.mxu0 0
      %314 = vmatpush1.bf16.msra.mxu0 0
      %315 = vmatprep.subr.bf16.mxu0 0
      %316 = vmatpush1.bf16.msra.mxu0 0
      %317 = vmatprep.subr.bf16.mxu0 0
      %318 = vmatpush1.bf16.msra.mxu0 0
      %319 = vmatprep.subr.bf16.mxu0 0
      %320 = vmatpush1.bf16.msra.mxu0 0
      %321 = vmatprep.subr.bf16.mxu0 0
      %322 = vmatpush1.bf16.msra.mxu0 0
      %323 = vmatprep.mubr.bf16.mxu0 0
      %324 = vmatmul.mubr.bf16.gmra.mrb[0].mxu0 %v268
      %v325 = vpop.f32.mrb[0].mxu0
      %v326 = vadd.f32 0.0, %v325
      %v327 = vpop.f32.mrb[0].mxu0
      %v328 = vpop.f32.mrb[0].mxu0
      %v329 = vadd.f32 0.0, %v328
      %v330 = vpop.f32.mrb[0].mxu0
      %331 = vmatprep.mubr.bf16.mxu0 0
      %332 = vmatmul.mubr.bf16.gmra.mrb[0].mxu0 %v271
      %v333 = vpop.f32.mrb[0].mxu0
      %v334 = vadd.f32 0.0, %v333
      %v335 = vpop.f32.mrb[0].mxu0
      %v336 = vpop.f32.mrb[0].mxu0
      %v337 = vadd.f32 0.0, %v336
      %v338 = vpop.f32.mrb[0].mxu0
      %339 = vmatprep.mubr.bf16.mxu0 0
      %340 = vmatmul.mubr.bf16.gmra.mrb[0].mxu0 %v274
      %v341 = vpop.f32.mrb[0].mxu0
      %v342 = vadd.f32 0.0, %v341
      %v343 = vpop.f32.mrb[0].mxu0
      %v344 = vpop.f32.mrb[0].mxu0
      %v345 = vadd.f32 0.0, %v344
      %v346 = vpop.f32.mrb[0].mxu0
      %347 = vmatprep.mubr.bf16.mxu0 0
      %348 = vmatmul.mubr.bf16.gmra.mrb[0].mxu0 %v277
      %v349 = vpop.f32.mrb[0].mxu0
      %v350 = vadd.f32 0.0, %v349
      %v351 = vpop.f32.mrb[0].mxu0
      %v352 = vpop.f32.mrb[0].mxu0
      %v353 = vadd.f32 0.0, %v352
      %v354 = vpop.f32.mrb[0].mxu0
      %355 = vmatprep.mubr.bf16.mxu0 0
      %356 = vmatmul.mubr.bf16.gmra.mrb[0].mxu0 %v280
      %v357 = vpop.f32.mrb[0].mxu0
      %v358 = vadd.f32 0.0, %v357
      %v359 = vpop.f32.mrb[0].mxu0
      %v360 = vpop.f32.mrb[0].mxu0
      %v361 = vadd.f32 0.0, %v360
      %v362 = vpop.f32.mrb[0].mxu0
      %363 = vmatprep.mubr.bf16.mxu0 0
      %364 = vmatmul.mubr.bf16.gmra.mrb[0].mxu0 %v283
      %v365 = vpop.f32.mrb[0].mxu0
      %v366 = vadd.f32 0.0, %v365
      %v367 = vpop.f32.mrb[0].mxu0
      %v368 = vpop.f32.mrb[0].mxu0
      %v369 = vadd.f32 0.0, %v368
      %v370 = vpop.f32.mrb[0].mxu0
      %371 = vmatprep.mubr.bf16.mxu0 0
      %372 = vmatmul.mubr.bf16.gmra.mrb[0].mxu0 %v286
      %v373 = vpop.f32.mrb[0].mxu0
      %v374 = vadd.f32 0.0, %v373
      %v375 = vpop.f32.mrb[0].mxu0
      %v376 = vpop.f32.mrb[0].mxu0
      %v377 = vadd.f32 0.0, %v376
      %v378 = vpop.f32.mrb[0].mxu0
      %379 = vmatprep.mubr.bf16.mxu0 0
      %380 = vmatmul.mubr.bf16.gmra.mrb[0].mxu0 %v289
      %v381 = vpop.f32.mrb[0].mxu0
      %v382 = vadd.f32 0.0, %v381
      %v383 = vpop.f32.mrb[0].mxu0
      %v384 = vpop.f32.mrb[0].mxu0
      %v385 = vadd.f32 0.0, %v384
      %v386 = vpop.f32.mrb[0].mxu0
      %387 = vdwg.mxu0
      %v388 = vld [vmem:[%s2] sm:$0x1]
      %v390 = vlaneseq
      %v391 = vshrl.u32 %v390, 7
      %v392 = vsub.s32 0, %v391
      %v393 = vrot.slane %v388, %v392
      %v395 = vmul.f32 %v326, %v393
      %v396 = vmul.f32 %v329, %v393
      %v397 = vmul.f32 %v334, %v393
      %v398 = vmul.f32 %v337, %v393
      %v399 = vmul.f32 %v342, %v393
      %v400 = vmul.f32 %v345, %v393
      %v401 = vmul.f32 %v350, %v393
      %v402 = vmul.f32 %v353, %v393
      %v403 = vmul.f32 %v358, %v393
      %v404 = vmul.f32 %v361, %v393
      %v405 = vmul.f32 %v366, %v393
      %v406 = vmul.f32 %v369, %v393
      %v407 = vmul.f32 %v374, %v393
      %v408 = vmul.f32 %v377, %v393
      %v409 = vmul.f32 %v382, %v393
      %v410 = vmul.f32 %v385, %v393
      %v411 = vld [vmem:[%s3] sm:$0x1]
      %v413 = vlaneseq
      %v414 = vshrl.u32 %v413, 7
      %v415 = vsub.s32 0, %v414
      %v416 = vrot.slane %v411, %v415
      %v418 = vadd.f32 %v395, %v416
      %v419 = vadd.f32 %v396, %v416
      %v420 = vadd.f32 %v397, %v416
      %v421 = vadd.f32 %v398, %v416
      %v422 = vadd.f32 %v399, %v416
      %v423 = vadd.f32 %v400, %v416
      %v424 = vadd.f32 %v401, %v416
      %v425 = vadd.f32 %v402, %v416
      %v426 = vadd.f32 %v403, %v416
      %v427 = vadd.f32 %v404, %v416
      %v428 = vadd.f32 %v405, %v416
      %v429 = vadd.f32 %v406, %v416
      %v430 = vadd.f32 %v407, %v416
      %v431 = vadd.f32 %v408, %v416
      %v432 = vadd.f32 %v409, %v416
      %v433 = vadd.f32 %v410, %v416
      %vm434 = vcmp.ge.f32.partialorder %v418, 0.0
      %vm435 = vcmp.ge.f32.partialorder %v419, 0.0
      %vm436 = vcmp.ge.f32.partialorder %v420, 0.0
      %vm437 = vcmp.ge.f32.partialorder %v421, 0.0
      %vm438 = vcmp.ge.f32.partialorder %v422, 0.0
      %vm439 = vcmp.ge.f32.partialorder %v423, 0.0
      %vm440 = vcmp.ge.f32.partialorder %v424, 0.0
      %vm441 = vcmp.ge.f32.partialorder %v425, 0.0
      %vm442 = vcmp.ge.f32.partialorder %v426, 0.0
      %vm443 = vcmp.ge.f32.partialorder %v427, 0.0
      %vm444 = vcmp.ge.f32.partialorder %v428, 0.0
      %vm445 = vcmp.ge.f32.partialorder %v429, 0.0
      %vm446 = vcmp.ge.f32.partialorder %v430, 0.0
      %vm447 = vcmp.ge.f32.partialorder %v431, 0.0
      %vm448 = vcmp.ge.f32.partialorder %v432, 0.0
      %vm449 = vcmp.ge.f32.partialorder %v433, 0.0
      %v450 = vmul.f32 %v418, 0.01
      %v451 = vmul.f32 %v419, 0.01
      %v452 = vmul.f32 %v420, 0.01
      %v453 = vmul.f32 %v421, 0.01
      %v454 = vmul.f32 %v422, 0.01
      %v455 = vmul.f32 %v423, 0.01
      %v456 = vmul.f32 %v424, 0.01
      %v457 = vmul.f32 %v425, 0.01
      %v458 = vmul.f32 %v426, 0.01
      %v459 = vmul.f32 %v427, 0.01
      %v460 = vmul.f32 %v428, 0.01
      %v461 = vmul.f32 %v429, 0.01
      %v462 = vmul.f32 %v430, 0.01
      %v463 = vmul.f32 %v431, 0.01
      %v464 = vmul.f32 %v432, 0.01
      %v465 = vmul.f32 %v433, 0.01
      %v466 = vsel %vm434, %v418, %v450
      %v467 = vsel %vm435, %v419, %v451
      %v468 = vsel %vm436, %v420, %v452
      %v469 = vsel %vm437, %v421, %v453
      %v470 = vsel %vm438, %v422, %v454
      %v471 = vsel %vm439, %v423, %v455
      %v472 = vsel %vm440, %v424, %v456
      %v473 = vsel %vm441, %v425, %v457
      %v474 = vsel %vm442, %v426, %v458
      %v475 = vsel %vm443, %v427, %v459
      %v476 = vsel %vm444, %v428, %v460
      %v477 = vsel %vm445, %v429, %v461
      %v478 = vsel %vm446, %v430, %v462
      %v479 = vsel %vm447, %v431, %v463
      %v480 = vsel %vm448, %v432, %v464
      %v481 = vsel %vm449, %v433, %v465
      %482 = vst [vmem:[%s199] sm:$0xff] %v466
      %483 = vst [vmem:[%s199 + $0x8] sm:$0xff] %v467
      %484 = vst [vmem:[%s199 + $0x10] sm:$0xff] %v468
      %485 = vst [vmem:[%s199 + $0x18] sm:$0xff] %v469
      %486 = vst [vmem:[%s199 + $0x20] sm:$0xff] %v470
      %487 = vst [vmem:[%s199 + $0x28] sm:$0xff] %v471
      %488 = vst [vmem:[%s199 + $0x30] sm:$0xff] %v472
      %489 = vst [vmem:[%s199 + $0x38] sm:$0xff] %v473
      %490 = vst [vmem:[%s199 + $0x40] sm:$0xff] %v474
      %491 = vst [vmem:[%s199 + $0x48] sm:$0xff] %v475
      %492 = vst [vmem:[%s199 + $0x50] sm:$0xff] %v476
      %493 = vst [vmem:[%s199 + $0x58] sm:$0xff] %v477
      %494 = vst [vmem:[%s199 + $0x60] sm:$0xff] %v478
      %495 = vst [vmem:[%s199 + $0x68] sm:$0xff] %v479
      %496 = vst [vmem:[%s199 + $0x70] sm:$0xff] %v480
      %497 = vst [vmem:[%s199 + $0x78] sm:$0xff] %v481
      %s498 = smul.u32 16, %s15
      %p499 = scmp.lt.s32.totalorder %s498, 63
      %s500 = scalar_select %p499, %s498, 63
      %s501 = smul.addr %s500, 8
      %s502 = scalar_lea.vmem %s4, %s501
      // Predicated region
      $region37: #{conv2d_decode_block.3} parent=35 // pred_check
        %p503 = pneg %p122
      $region38: #{conv2d_decode_block.3} parent=35 // pred_check_branch
        %505 = sbr.rel (%p503) target = $region40
      $region39: #{conv2d_decode_block.3} parent=35 // pred_region
        %s506 = smul.u32 16, %s15
      $region40: #{conv2d_decode_block.3} parent=35 // pred_fallthru
        _
    $region36: #{conv2d_decode_block.3} parent=5 // pred_fallthru
      _
    %p507 = scmp.le.s32.totalorder 2, %s10
    // Predicated region
    $region41: #{conv2d_decode_block.3} parent=5 // pred_check
      %p508 = pneg %p507
    $region42: #{conv2d_decode_block.3} parent=5 // pred_check_branch
      %510 = sbr.rel (%p508) target = $region44
    $region43: #{conv2d_decode_block.3} parent=5 // pred_region
      %s511 = ssub.s32 %s10, 2
      // Predicated region
      $region45: #{conv2d_decode_block.3} parent=43 // pred_check
        %p512 = pneg %p128
      $region46: #{conv2d_decode_block.3} parent=43 // pred_check_branch
        %514 = sbr.rel (%p512) target = $region48
      $region47: #{conv2d_decode_block.3} parent=43 // pred_region
        %s515 = smul.u32 16, %s16
        %p516 = scmp.lt.s32.totalorder %s515, 63
        %s517 = scalar_select %p516, %s515, 63
        %s518 = smul.addr %s517, 8
        %s519 = scalar_lea.vmem %s4, %s518
      $region48: #{conv2d_decode_block.3} parent=43 // pred_fallthru
        _
    $region44: #{conv2d_decode_block.3} parent=5 // pred_fallthru
      _
  $region6: #{conv2d_decode_block.3} parent=0 // loop_footer
    %s14 = sadd.s32 1, %s10
  $region7: #{conv2d_decode_block.3} parent=0 // loop_footer_branch
    %9 = sbr.rel target = $region3
  $region8: #{conv2d_decode_block.3} parent=0 // loop_exit
    _

</llo_original>
